<compile_context>
chip_gen: v5e
topology: v5e:2x2
jax: 0.10.0
libtpu: 0.0.40
codegen_flags: <defaults>
</compile_context>

<pallas_src>
import jax
import jax.numpy as jnp
from jax.experimental import pallas as pl
from jax.experimental.pallas import tpu as pltpu


def _round_up(x, m):
    return ((x + m - 1) // m) * m


def _latent_embedding_kernel(y_ref, tab_ref, out_ref):
    # y_ref:   VMEM (TB, 1) int32 label chunk
    # tab_ref: VMEM (nlabels_pad, embed_dim_pad) — full (padded) table, resident
    # out_ref: VMEM (TB, embed_dim_pad)
    labels = y_ref[...]                                   # (TB, 1) int32
    tb = labels.shape[0]
    nlab_pad = tab_ref.shape[0]

    # Gather as one-hot @ table on the MXU.
    lane_ids = jax.lax.broadcasted_iota(jnp.int32, (tb, nlab_pad), 1)
    onehot = (labels == lane_ids).astype(tab_ref.dtype)   # (TB, nlabels_pad)
    rows = jnp.dot(onehot, tab_ref[...],
                   preferred_element_type=jnp.float32)    # (TB, embed_dim_pad)

    # L2 normalize along embed_dim (padded cols are zero -> no effect on norm).
    sq_sum = jnp.sum(rows * rows, axis=-1, keepdims=True)
    out_ref[...] = (rows * jax.lax.rsqrt(sq_sum)).astype(out_ref.dtype)


def latent_embedding(y, emb_table, *, block_batch=128):
    """Equivalent of LatentEmbedding.forward(y) with weights `emb_table`."""
    B = y.shape[0]
    nlabels, embed_dim = emb_table.shape
    dtype = emb_table.dtype
    itemsize = jnp.dtype(dtype).itemsize

    # Padding: vocab -> multiple of 256 (covers 128x128 and 256x256 MXU tiles),
    # embed_dim -> multiple of 128 lanes, batch -> multiple of the batch tile.
    nlab_pad = _round_up(max(nlabels, 1), 256)
    ed_pad = _round_up(embed_dim, 128)
    TB = min(block_batch, _round_up(max(B, 1), 8))
    B_pad = _round_up(B, TB)

    tab_pad = jnp.pad(emb_table,
                      ((0, nlab_pad - nlabels), (0, ed_pad - embed_dim)))
    y_pad = jnp.pad(y.astype(jnp.int32), (0, B_pad - B)).reshape(B_pad, 1)

    # VMEM budget: table (assume double-buffered) + in/out block double buffers.
    vmem_needed = (2 * nlab_pad * ed_pad * itemsize
                   + 2 * TB * ed_pad * itemsize      # output blocks
                   + 2 * TB * ed_pad * 4             # f32 intermediates
                   + 2 * TB * 4                      # label blocks
                   + (1 << 20))
    vmem_limit = int(min(max(vmem_needed, 32 << 20), 64 << 20))

    grid = (B_pad // TB,)
    out = pl.pallas_call(
        _latent_embedding_kernel,
        out_shape=jax.ShapeDtypeStruct((B_pad, ed_pad), dtype),
        grid_spec=pltpu.PrefetchScalarGridSpec(
            num_scalar_prefetch=0,
            grid=grid,
            in_specs=[
                pl.BlockSpec((TB, 1), lambda i: (i, 0)),            # labels
                pl.BlockSpec((nlab_pad, ed_pad), lambda i: (0, 0)),  # table
            ],
            out_specs=pl.BlockSpec((TB, ed_pad), lambda i: (i, 0)),
        ),
        compiler_params=pltpu.CompilerParams(
            dimension_semantics=("parallel",),
            vmem_limit_bytes=vmem_limit,
        ),
    )(y_pad, tab_pad)

    return out[:B, :embed_dim]


if __name__ == "__main__":
    # Module config (small, consistent with __init__(nlabels, embed_dim))
    nlabels = 16
    embed_dim = 128
    batch = 8

    key = jax.random.PRNGKey(0)
    k_emb, k_y = jax.random.split(key)

    # nn.Embedding default init is N(0, 1)
    emb_table = jax.random.normal(k_emb, (nlabels, embed_dim), dtype=jnp.float32)
    y = jax.random.randint(k_y, (batch,), 0, nlabels, dtype=jnp.int32)

    out = latent_embedding(y, emb_table)
    out = jax.block_until_ready(out)

    # sanity check against a plain-JAX reference of the PyTorch forward
    ref = emb_table[y]
    ref = ref / jnp.linalg.norm(ref, axis=1, keepdims=True)
    assert out.shape == (batch, embed_dim)
    assert jnp.allclose(out, ref, atol=1e-5, rtol=1e-4), (
        float(jnp.max(jnp.abs(out - ref))))

    print("KERNEL_OK")
</pallas_src>

<mosaic_0001>
module attributes {stable_mosaic.version = 11 : i64} {
  func.func @_latent_embedding_kernel(%arg0: i32, %arg1: memref<8x1xi32, #tpu.memory_space<vmem>>, %arg2: memref<256x128xf32, #tpu.memory_space<vmem>>, %arg3: memref<8x128xf32, #tpu.memory_space<vmem>>) attributes {dimension_semantics = [#tpu.dimension_semantics<parallel>], iteration_bounds = array<i64: 1>, scalar_prefetch = 0 : i64, scratch_operands = 0 : i64, tpu.core_type = #tpu.core_type<tc>, window_params = [{transform_indices = @transform_0, window_bounds = array<i64: 8, 1>}, {pipeline_mode = #tpu.pipeline_mode<synchronous>, transform_indices = @transform_1, window_bounds = array<i64: 256, 128>}, {transform_indices = @transform_2, window_bounds = array<i64: 8, 128>}]} {
    %c0 = arith.constant 0 : index
    %c0_0 = arith.constant 0 : index
    %0 = vector.load %arg1[%c0, %c0_0] : memref<8x1xi32, #tpu.memory_space<vmem>>, vector<8x1xi32>
    %1 = tpu.iota {dimensions = array<i32: 1>} : vector<8x256xi32>
    %2 = vector.broadcast %0 : vector<8x1xi32> to vector<8x256xi32>
    %3 = arith.cmpi eq, %2, %1 : vector<8x256xi32>
    %4 = arith.extui %3 : vector<8x256xi1> to vector<8x256xi32>
    %5 = arith.sitofp %4 : vector<8x256xi32> to vector<8x256xf32>
    %c0_1 = arith.constant 0 : index
    %c0_2 = arith.constant 0 : index
    %6 = vector.load %arg2[%c0_1, %c0_2] : memref<256x128xf32, #tpu.memory_space<vmem>>, vector<256x128xf32>
    %cst = arith.constant dense<0.000000e+00> : vector<8x128xf32>
    %7 = tpu.matmul %5, %6, %cst {dimension_numbers = #tpu.dot_dimension_numbers<[1], [0], [0], [1], [0, 0, 1, 1], [], []>} : vector<8x256xf32>, vector<256x128xf32>, vector<8x128xf32> -> vector<8x128xf32>
    %8 = arith.mulf %7, %7 : vector<8x128xf32>
    %cst_3 = arith.constant dense<0.000000e+00> : vector<8xf32>
    %9 = vector.multi_reduction <add>, %8, %cst_3 [1] : vector<8x128xf32> to vector<8xf32>
    %10 = vector.shape_cast %9 : vector<8xf32> to vector<8x1xf32>
    %11 = math.rsqrt %10 : vector<8x1xf32>
    %12 = vector.broadcast %11 : vector<8x1xf32> to vector<8x128xf32>
    %13 = arith.mulf %7, %12 : vector<8x128xf32>
    %c0_4 = arith.constant 0 : index
    %c0_5 = arith.constant 0 : index
    %14 = vector.load %arg3[%c0_4, %c0_5] : memref<8x128xf32, #tpu.memory_space<vmem>>, vector<8x128xf32>
    tpu.vector_store %arg3[%c0_4, %c0_5], %13 {strides = array<i32>} : memref<8x128xf32, #tpu.memory_space<vmem>>, vector<8x128xf32>,
    return
  }
  func.func @transform_0(%arg0: i32) -> (i32, i32) {
    %c0_i32 = arith.constant 0 : i32
    %c0_i32_0 = arith.constant 0 : i32
    return %arg0, %c0_i32 : i32, i32
  }
  func.func @transform_1(%arg0: i32) -> (i32, i32) {
    %c0_i32 = arith.constant 0 : i32
    %c0_i32_0 = arith.constant 0 : i32
    %c0_i32_1 = arith.constant 0 : i32
    return %c0_i32, %c0_i32_0 : i32, i32
  }
  func.func @transform_2(%arg0: i32) -> (i32, i32) {
    %c0_i32 = arith.constant 0 : i32
    %c0_i32_0 = arith.constant 0 : i32
    return %arg0, %c0_i32 : i32, i32
  }
}

</mosaic_0001>

<llo_original>
// kernel: tpu_custom_call.1
$region0: #{tpu_custom_call.1}
  #allocation0 [shape = 'u32[]', space=smem, size = 0x4, offset = 0x4, fixed_abs, tag = 'smem constant byte address 0x4 - core index']
  #allocation1 [shape = 'u32[72,128]{1,0:T(1,128)}', space=vmem, size = 0x9000, scoped, tag = 'internal scratch']
  %s0 = inlined_call_operand.vmem [shape: s32[8,1], index: 0, kind: input, shape index: {}]
  %s1 = inlined_call_operand.hbm [shape: f32[256,128], index: 1, kind: input, shape index: {}]
  %s2 = inlined_call_operand.hbm [shape: f32[8,128], index: 2, kind: output, shape index: {}]
  %s3 = sld [smem:[#allocation0]]
  $region22: #{tpu_custom_call.1} parent=0
    _
  %s5 = ssub.s32 1, %s3
  %s6 = scalar_select 0, %s5, %s3
  $region1: #{tpu_custom_call.1} parent=0
    #allocation2 [shape = 'u8[131072]{0}', space=vmem, size = 0x20000, scoped, tag = 'input window, operand 1, single buffered']
    #allocation3 [shape = 's32[1]{0}', space=sflag, size = 0x4, scoped, tag = 'scoped memory for tpu_custom_call.1']
    #allocation4 [shape = 's32[1]{0}', space=sflag, size = 0x4, scoped, tag = 'scoped memory for tpu_custom_call.1']
    #allocation5 [shape = 'u8[4096]{0}', space=vmem, size = 0x1000, scoped, tag = 'output window, operand 0, single buffered']
    %7 = vsyncpa [#allocation3], 0
    %8 = vsyncpa [#allocation4], 0
    // Predicated region
    $region2: #{tpu_custom_call.1} parent=1 // pred_check
      _
    $region3: #{tpu_custom_call.1} parent=1 // pred_check_branch
      %10 = sbr.rel (0) target = $region5
    $region4: #{tpu_custom_call.1} parent=1 // pred_region
      _
    $region5: #{tpu_custom_call.1} parent=1 // pred_fallthru
      _
    // Predicated region
    $region6: #{tpu_custom_call.1} parent=1 // pred_check
      _
    $region7: #{tpu_custom_call.1} parent=1 // pred_check_branch
      %12 = sbr.rel (0) target = $region9
    $region8: #{tpu_custom_call.1} parent=1 // pred_region
      %14 = vsyncadd [#allocation3], 0
      %s15 = sshll.u32 %s1, 4
      %s16 = int_to_ptr.hbm [resolvable:$true] %s15
      %s17 = sshll.u32 [#allocation2], 4
      %s18 = int_to_ptr.vmem [resolvable:$true] %s17
      %23 = dma.hbm_to_vmem [thread:$0]  %s16, 4096, %s18, [#allocation3], 128, 128, 8
    $region9: #{tpu_custom_call.1} parent=1 // pred_fallthru
      _
    // Predicated region
    $region10: #{tpu_custom_call.1} parent=1 // pred_check
      _
    $region11: #{tpu_custom_call.1} parent=1 // pred_check_branch
      %25 = sbr.rel (0) target = $region13
    $region12: #{tpu_custom_call.1} parent=1 // pred_region
      %27 = dma.done [#allocation3], 4096
    $region13: #{tpu_custom_call.1} parent=1 // pred_fallthru
      _
    %v28 = vld [vmem:[%s0] sm:$0xff]
    %v29 = vlaneseq
    %v30 = vand.u32 %v29, 127
    %v31 = vadd.s32 %v30, 128
    %32 = vset.pattern.permute.xlu0 0
    %33 = vperm.xlu0 %32, %v28
    %v34 = vpop.permute.xlu0 %33
    %vm35 = vcmp.eq.s32.totalorder %v34, %v30
    %vm36 = vcmp.eq.s32.totalorder %v34, %v31
    %v37 = vsel %vm35, 1, 0
    %v38 = vsel %vm36, 1, 0
    %v39 = vcvt.s32.f32 %v37
    %v40 = vcvt.s32.f32 %v38
    %v41 = vld [vmem:[#allocation2] sm:$0xff]
    %v42 = vld [vmem:[#allocation2 + $0x8] sm:$0xff]
    %v43 = vld [vmem:[#allocation2 + $0x10] sm:$0xff]
    %v44 = vld [vmem:[#allocation2 + $0x18] sm:$0xff]
    %v45 = vld [vmem:[#allocation2 + $0x20] sm:$0xff]
    %v46 = vld [vmem:[#allocation2 + $0x28] sm:$0xff]
    %v47 = vld [vmem:[#allocation2 + $0x30] sm:$0xff]
    %v48 = vld [vmem:[#allocation2 + $0x38] sm:$0xff]
    %v49 = vld [vmem:[#allocation2 + $0x40] sm:$0xff]
    %v50 = vld [vmem:[#allocation2 + $0x48] sm:$0xff]
    %v51 = vld [vmem:[#allocation2 + $0x50] sm:$0xff]
    %v52 = vld [vmem:[#allocation2 + $0x58] sm:$0xff]
    %v53 = vld [vmem:[#allocation2 + $0x60] sm:$0xff]
    %v54 = vld [vmem:[#allocation2 + $0x68] sm:$0xff]
    %v55 = vld [vmem:[#allocation2 + $0x70] sm:$0xff]
    %v56 = vld [vmem:[#allocation2 + $0x78] sm:$0xff]
    %v57 = vld [vmem:[#allocation2 + $0x80] sm:$0xff]
    %v58 = vld [vmem:[#allocation2 + $0x88] sm:$0xff]
    %v59 = vld [vmem:[#allocation2 + $0x90] sm:$0xff]
    %v60 = vld [vmem:[#allocation2 + $0x98] sm:$0xff]
    %v61 = vld [vmem:[#allocation2 + $0xa0] sm:$0xff]
    %v62 = vld [vmem:[#allocation2 + $0xa8] sm:$0xff]
    %v63 = vld [vmem:[#allocation2 + $0xb0] sm:$0xff]
    %v64 = vld [vmem:[#allocation2 + $0xb8] sm:$0xff]
    %v65 = vld [vmem:[#allocation2 + $0xc0] sm:$0xff]
    %v66 = vld [vmem:[#allocation2 + $0xc8] sm:$0xff]
    %v67 = vld [vmem:[#allocation2 + $0xd0] sm:$0xff]
    %v68 = vld [vmem:[#allocation2 + $0xd8] sm:$0xff]
    %v69 = vld [vmem:[#allocation2 + $0xe0] sm:$0xff]
    %v70 = vld [vmem:[#allocation2 + $0xe8] sm:$0xff]
    %v71 = vld [vmem:[#allocation2 + $0xf0] sm:$0xff]
    %v72 = vld [vmem:[#allocation2 + $0xf8] sm:$0xff]
    %73 = vmatpush.msra.mxu0 %v56
    %74 = vmatpush.msra.mxu0 %v55
    %75 = vmatpush.msra.mxu0 %v54
    %76 = vmatpush.msra.mxu0 %v53
    %77 = vmatpush.msra.mxu0 %v52
    %78 = vmatpush.msra.mxu0 %v51
    %79 = vmatpush.msra.mxu0 %v50
    %80 = vmatpush.msra.mxu0 %v49
    %81 = vmatpush.msra.mxu0 %v48
    %82 = vmatpush.msra.mxu0 %v47
    %83 = vmatpush.msra.mxu0 %v46
    %84 = vmatpush.msra.mxu0 %v45
    %85 = vmatpush.msra.mxu0 %v44
    %86 = vmatpush.msra.mxu0 %v43
    %87 = vmatpush.msra.mxu0 %v42
    %88 = vmatpush.msra.mxu0 %v41
    %89 = vmatmul.f32.gmra.mxu0 %v39
    %v90 = vpop.f32.mrf.mxu0
    %v91 = vadd.f32 0.0, %v90
    %92 = vdwg.mxu0
    %93 = vmatpush.msra.mxu0 %v72
    %94 = vmatpush.msra.mxu0 %v71
    %95 = vmatpush.msra.mxu0 %v70
    %96 = vmatpush.msra.mxu0 %v69
    %97 = vmatpush.msra.mxu0 %v68
    %98 = vmatpush.msra.mxu0 %v67
    %99 = vmatpush.msra.mxu0 %v66
    %100 = vmatpush.msra.mxu0 %v65
    %101 = vmatpush.msra.mxu0 %v64
    %102 = vmatpush.msra.mxu0 %v63
    %103 = vmatpush.msra.mxu0 %v62
    %104 = vmatpush.msra.mxu0 %v61
    %105 = vmatpush.msra.mxu0 %v60
    %106 = vmatpush.msra.mxu0 %v59
    %107 = vmatpush.msra.mxu0 %v58
    %108 = vmatpush.msra.mxu0 %v57
    %109 = vmatmul.f32.gmra.mxu0 %v40
    %v110 = vpop.f32.mrf.mxu0
    %v111 = vadd.f32 %v91, %v110
    %112 = vdwg.mxu0
    %v113 = vmul.f32 %v111, %v111
    %114 = vadd.xlane.f32.xlu0 %v113
    %v115 = vpop.xlane.xlu0 %114
    %v116 = vrsqrt.pop %v115
    %v117 = vmul.f32 %v116, %v115
    %v118 = vmul.f32 %v117, %v116
    %v119 = vmul.f32 0.5, %v118
    %v120 = vsub.f32 1.5, %v119
    %v121 = vmul.f32 %v116, %v120
    %vm122 = vweird.f32 %v115
    %vm123 = vweird.f32 %v116
    %vm124 = vmor %vm122, %vm123
    %v125 = vsel %vm124, %v116, %v121
    %v126 = vmul.f32 %v111, %v125
    %127 = vst [vmem:[#allocation5] sm:$0xff] %v126
    // Predicated region
    $region14: #{tpu_custom_call.1} parent=1 // pred_check
      _
    $region15: #{tpu_custom_call.1} parent=1 // pred_check_branch
      %129 = sbr.rel (0) target = $region17
    $region16: #{tpu_custom_call.1} parent=1 // pred_region
      %131 = vsyncadd [#allocation4], 0
      %s133 = sshll.u32 [#allocation5], 4
      %s134 = int_to_ptr.vmem [resolvable:$true] %s133
      %s135 = sshll.u32 %s2, 4
      %s136 = int_to_ptr.hbm [resolvable:$true] %s135
      %138 = dma.vmem_to_hbm [thread:$0]  %s134, 128, %s136, [#allocation4]
    $region17: #{tpu_custom_call.1} parent=1 // pred_fallthru
      _
    // Predicated region
    $region18: #{tpu_custom_call.1} parent=1 // pred_check
      _
    $region19: #{tpu_custom_call.1} parent=1 // pred_check_branch
      %140 = sbr.rel (0) target = $region21
    $region20: #{tpu_custom_call.1} parent=1 // pred_region
      %142 = dma.done [#allocation4], 128
    $region21: #{tpu_custom_call.1} parent=1 // pred_fallthru
      _
    %143 = vsyncpa [#allocation3], 1
    %144 = vsyncpa [#allocation4], 1

</llo_original>
